<compile_context>
chip_gen: v7x
topology: tpu7x:2x2x1
jax: 0.10.0
libtpu: 0.0.40
codegen_flags: <defaults>
</compile_context>

<pallas_src>
import jax
import jax.numpy as jnp
import numpy as np
from jax.experimental import pallas as pl
from jax.experimental.pallas import tpu as pltpu


def _round_up(x: int, m: int) -> int:
    return ((x + m - 1) // m) * m


# ----------------------------- Pallas kernel ---------------------------------
def critic_kernel(x_ref, w1_ref, b1_ref, w2_ref, b2_ref, w3_ref, b3_ref, o_ref):
    """Fused 3-layer MLP on one batch tile, transposed (lane-dense) activations.

    x_ref : (TILE_B, in_dim)         streamed batch tile
    w1    : (hidden, in_dim)         PyTorch (out, in) layout, VMEM-resident
    w2    : (hidden, hidden)
    w3    : (1, hidden)
    b1,b2 : (hidden, 1), b3 : (1, 1) column biases (broadcast over lanes)
    o_ref : (1, TILE_B)              lane-dense output slab
    """
    x = x_ref[...]

    # Layer 1 (transposed): (hidden, TILE_B) = w1 . x^T
    h = jax.lax.dot_general(w1_ref[...], x, (((1,), (1,)), ((), ())),
                            preferred_element_type=jnp.float32)
    h = jnp.maximum(h + b1_ref[...], 0.0)                       # bias + ReLU (f32)

    # Layer 2: (hidden, TILE_B) = w2 @ h
    h = jax.lax.dot_general(w2_ref[...], h.astype(w2_ref.dtype),
                            (((1,), (0,)), ((), ())),
                            preferred_element_type=jnp.float32)
    h = jnp.maximum(h + b2_ref[...], 0.0)

    # Layer 3: (1, TILE_B) = w3 @ h  -- batch on the lane axis, unmasked store.
    out = jax.lax.dot_general(w3_ref[...], h.astype(w3_ref.dtype),
                              (((1,), (0,)), ((), ())),
                              preferred_element_type=jnp.float32)
    o_ref[...] = (out + b3_ref[...]).astype(o_ref.dtype)


# ------------------------------- wrapper --------------------------------------
def _choose_tile_b(B: int, max_tile: int = 2048) -> int:
    # Small batch: one tile whose block equals the full dim (no padding at all).
    if B <= 1024:
        return B
    # Otherwise split into >= 2 tiles (keeps both v7x TensorCores busy), each a
    # multiple of 8 sublanes, capped so the tile footprint fits v7x/v5e VMEM.
    return min(max_tile, _round_up(pl.cdiv(B, 2), 8))


def _vmem_budget(tile_b: int, in_dim: int, hidden: int, in_bytes: int) -> int:
    lane = lambda n: _round_up(max(n, 1), 128)
    sub = lambda n: _round_up(max(n, 1), 8)
    x_buf = 2 * sub(tile_b) * lane(in_dim) * in_bytes            # double-buffered x tile
    o_buf = 2 * sub(1) * lane(tile_b) * 4                        # double-buffered out tile
    w_buf = 2 * (sub(hidden) * lane(in_dim)
                 + sub(hidden) * lane(hidden)
                 + sub(1) * lane(hidden)) * in_bytes             # weights (worst-case 2 bufs)
    b_buf = 2 * (2 * sub(hidden) * lane(1) + sub(1) * lane(1)) * 4
    act = 2 * sub(hidden) * lane(tile_b) * 4                     # h1/h2 intermediates (f32)
    total = x_buf + o_buf + w_buf + b_buf + act
    # generous headroom, never below the v6e/v7x scoped default, capped for v7x (64 MiB).
    return int(min(max(2 * total + (8 << 20), 32 << 20), 64 << 20))


def critic_forward(state, w1, b1, w2, b2, w3, b3, *, max_tile_b: int = 2048,
                   use_bf16: bool = False):
    """state: (B, in_dim) f32.  Returns (B, 1) critic value (f32)."""
    B, in_dim = state.shape
    hidden = w1.shape[0]

    tile_b = _choose_tile_b(B, max_tile_b)
    num_tiles = pl.cdiv(B, tile_b)

    if use_bf16:
        # Halves the dominant HBM traffic (reading x); MXU is bf16-native.
        state = state.astype(jnp.bfloat16)
        w1, w2, w3 = (w.astype(jnp.bfloat16) for w in (w1, w2, w3))

    def resident(arr):
        # Full-array block, same block every grid step -> stays VMEM-resident.
        nd = arr.ndim
        return pl.BlockSpec(arr.shape, lambda i, _nd=nd: (0,) * _nd)

    vmem_limit = _vmem_budget(tile_b, in_dim, hidden,
                              jnp.dtype(state.dtype).itemsize)

    out = pl.pallas_call(
        critic_kernel,
        out_shape=jax.ShapeDtypeStruct((num_tiles, tile_b), jnp.float32),
        grid=(num_tiles,),
        in_specs=[
            pl.BlockSpec((tile_b, in_dim), lambda i: (i, 0)),    # streamed batch tile
            resident(w1), resident(b1),
            resident(w2), resident(b2),
            resident(w3), resident(b3),
        ],
        out_specs=pl.BlockSpec((1, tile_b), lambda i: (i, 0)),   # lane-dense per-tile row
        compiler_params=pltpu.CompilerParams(
            dimension_semantics=("parallel",),                   # megacore-shardable batch
            vmem_limit_bytes=vmem_limit),
    )(state, w1, b1, w2, b2, w3, b3)

    # (num_tiles, tile_b) -> (B, 1); trailing garbage from the partial last input
    # block (if any) is sliced off here.
    return out.reshape(num_tiles * tile_b)[:B].reshape(B, 1)


# ------------------------- deterministic parameter init ----------------------
def orthogonal_init(key, out_features, in_features):
    """Deterministic orthogonal init (semantics of nn.init.orthogonal_)."""
    rows, cols = out_features, in_features
    flat = jax.random.normal(key, (max(rows, cols), min(rows, cols)), jnp.float32)
    q, r = jnp.linalg.qr(flat)
    d = jnp.diagonal(r)
    q = q * jnp.where(d >= 0, 1.0, -1.0)[None, :]
    if rows < cols:
        q = q.T
    return q[:rows, :cols]  # (out_features, in_features), PyTorch layout


def make_critic_params(key, in_dim, hidden_dim):
    k1, k2, k3 = jax.random.split(key, 3)
    w1 = orthogonal_init(k1, hidden_dim, in_dim)        # (hidden, in_dim)
    w2 = orthogonal_init(k2, hidden_dim, hidden_dim)    # (hidden, hidden)
    w3 = orthogonal_init(k3, 1, hidden_dim)             # (1, hidden)
    b1 = jnp.zeros((hidden_dim, 1), jnp.float32)        # column biases (zeros_)
    b2 = jnp.zeros((hidden_dim, 1), jnp.float32)
    b3 = jnp.zeros((1, 1), jnp.float32)
    return w1, b1, w2, b2, w3, b3


# ------------------------------ reference check -------------------------------
def critic_ref(state, w1, b1, w2, b2, w3, b3):
    h1 = jnp.maximum(state @ w1.T + b1[:, 0], 0.0)
    h2 = jnp.maximum(h1 @ w2.T + b2[:, 0], 0.0)
    return h2 @ w3.T + b3[0, 0]


if __name__ == "__main__":
    key = jax.random.PRNGKey(0)
    k_state, k_params = jax.random.split(key)

    B, in_dim, hidden_dim = 16, 16, 32
    state = jax.random.normal(k_state, (B, in_dim), jnp.float32)
    params = make_critic_params(k_params, in_dim, hidden_dim)

    value = critic_forward(state, *params)
    value = jax.block_until_ready(value)

    expected = critic_ref(state, *params)
    # f32 MXU matmuls are multi-pass bf16 internally; 1e-4 comfortably covers
    # the deviation at these sizes while still being a real correctness check.
    np.testing.assert_allclose(np.asarray(value), np.asarray(expected),
                               rtol=1e-4, atol=1e-4)
    assert value.shape == (B, 1)
    print("KERNEL_OK")
</pallas_src>

<mosaic_0001>
module attributes {stable_mosaic.version = 11 : i64} {
  func.func @critic_kernel(%arg0: i32, %arg1: memref<16x16xf32, #tpu.memory_space<vmem>>, %arg2: memref<32x16xf32, #tpu.memory_space<vmem>>, %arg3: memref<32x1xf32, #tpu.memory_space<vmem>>, %arg4: memref<32x32xf32, #tpu.memory_space<vmem>>, %arg5: memref<32x1xf32, #tpu.memory_space<vmem>>, %arg6: memref<1x32xf32, #tpu.memory_space<vmem>>, %arg7: memref<1x1xf32, #tpu.memory_space<vmem>>, %arg8: memref<1x16xf32, #tpu.memory_space<vmem>>) attributes {dimension_semantics = [#tpu.dimension_semantics<parallel>], iteration_bounds = array<i64: 1>, scalar_prefetch = 0 : i64, scratch_operands = 0 : i64, tpu.core_type = #tpu.core_type<tc>, window_params = [{transform_indices = @transform_0, window_bounds = array<i64: 16, 16>}, {pipeline_mode = #tpu.pipeline_mode<synchronous>, transform_indices = @transform_1, window_bounds = array<i64: 32, 16>}, {pipeline_mode = #tpu.pipeline_mode<synchronous>, transform_indices = @transform_2, window_bounds = array<i64: 32, 1>}, {pipeline_mode = #tpu.pipeline_mode<synchronous>, transform_indices = @transform_3, window_bounds = array<i64: 32, 32>}, {pipeline_mode = #tpu.pipeline_mode<synchronous>, transform_indices = @transform_4, window_bounds = array<i64: 32, 1>}, {pipeline_mode = #tpu.pipeline_mode<synchronous>, transform_indices = @transform_5, window_bounds = array<i64: 1, 32>}, {pipeline_mode = #tpu.pipeline_mode<synchronous>, transform_indices = @transform_6, window_bounds = array<i64: 1, 1>}, {transform_indices = @transform_7, window_bounds = array<i64: 1, 16>}]} {
    %c0 = arith.constant 0 : index
    %c0_0 = arith.constant 0 : index
    %0 = vector.load %arg1[%c0, %c0_0] : memref<16x16xf32, #tpu.memory_space<vmem>>, vector<16x16xf32>
    %c0_1 = arith.constant 0 : index
    %c0_2 = arith.constant 0 : index
    %1 = vector.load %arg2[%c0_1, %c0_2] : memref<32x16xf32, #tpu.memory_space<vmem>>, vector<32x16xf32>
    %cst = arith.constant dense<0.000000e+00> : vector<32x16xf32>
    %2 = tpu.matmul %1, %0, %cst {dimension_numbers = #tpu.dot_dimension_numbers<[1], [1], [0], [0], [0, 0, 1, 0], [], []>} : vector<32x16xf32>, vector<16x16xf32>, vector<32x16xf32> -> vector<32x16xf32>
    %c0_3 = arith.constant 0 : index
    %c0_4 = arith.constant 0 : index
    %3 = vector.load %arg3[%c0_3, %c0_4] : memref<32x1xf32, #tpu.memory_space<vmem>>, vector<32x1xf32>
    %4 = vector.broadcast %3 : vector<32x1xf32> to vector<32x16xf32>
    %5 = arith.addf %2, %4 : vector<32x16xf32>
    %cst_5 = arith.constant 0.000000e+00 : f32
    %6 = vector.broadcast %cst_5 : f32 to vector<32x16xf32>
    %7 = arith.maximumf %5, %6 : vector<32x16xf32>
    %c0_6 = arith.constant 0 : index
    %c0_7 = arith.constant 0 : index
    %8 = vector.load %arg4[%c0_6, %c0_7] : memref<32x32xf32, #tpu.memory_space<vmem>>, vector<32x32xf32>
    %cst_8 = arith.constant dense<0.000000e+00> : vector<32x16xf32>
    %9 = tpu.matmul %8, %7, %cst_8 {dimension_numbers = #tpu.dot_dimension_numbers<[1], [0], [0], [1], [0, 0, 1, 1], [], []>} : vector<32x32xf32>, vector<32x16xf32>, vector<32x16xf32> -> vector<32x16xf32>
    %c0_9 = arith.constant 0 : index
    %c0_10 = arith.constant 0 : index
    %10 = vector.load %arg5[%c0_9, %c0_10] : memref<32x1xf32, #tpu.memory_space<vmem>>, vector<32x1xf32>
    %11 = vector.broadcast %10 : vector<32x1xf32> to vector<32x16xf32>
    %12 = arith.addf %9, %11 : vector<32x16xf32>
    %cst_11 = arith.constant 0.000000e+00 : f32
    %13 = vector.broadcast %cst_11 : f32 to vector<32x16xf32>
    %14 = arith.maximumf %12, %13 : vector<32x16xf32>
    %c0_12 = arith.constant 0 : index
    %c0_13 = arith.constant 0 : index
    %15 = vector.load %arg6[%c0_12, %c0_13] : memref<1x32xf32, #tpu.memory_space<vmem>>, vector<1x32xf32>
    %cst_14 = arith.constant dense<0.000000e+00> : vector<1x16xf32>
    %16 = tpu.matmul %15, %14, %cst_14 {dimension_numbers = #tpu.dot_dimension_numbers<[1], [0], [0], [1], [0, 0, 1, 1], [], []>} : vector<1x32xf32>, vector<32x16xf32>, vector<1x16xf32> -> vector<1x16xf32>
    %c0_15 = arith.constant 0 : index
    %c0_16 = arith.constant 0 : index
    %17 = vector.load %arg7[%c0_15, %c0_16] : memref<1x1xf32, #tpu.memory_space<vmem>>, vector<1x1xf32>
    %18 = vector.broadcast %17 : vector<1x1xf32> to vector<1x16xf32>
    %19 = arith.addf %16, %18 : vector<1x16xf32>
    %c0_17 = arith.constant 0 : index
    %c0_18 = arith.constant 0 : index
    %20 = vector.load %arg8[%c0_17, %c0_18] : memref<1x16xf32, #tpu.memory_space<vmem>>, vector<1x16xf32>
    tpu.vector_store %arg8[%c0_17, %c0_18], %19 {strides = array<i32>} : memref<1x16xf32, #tpu.memory_space<vmem>>, vector<1x16xf32>,
    return
  }
  func.func @transform_0(%arg0: i32) -> (i32, i32) {
    %c0_i32 = arith.constant 0 : i32
    %c0_i32_0 = arith.constant 0 : i32
    return %arg0, %c0_i32 : i32, i32
  }
  func.func @transform_1(%arg0: i32) -> (i32, i32) {
    %c0_i32 = arith.constant 0 : i32
    %c0_i32_0 = arith.constant 0 : i32
    %c0_i32_1 = arith.constant 0 : i32
    return %c0_i32, %c0_i32_0 : i32, i32
  }
  func.func @transform_2(%arg0: i32) -> (i32, i32) {
    %c0_i32 = arith.constant 0 : i32
    %c0_i32_0 = arith.constant 0 : i32
    %c0_i32_1 = arith.constant 0 : i32
    return %c0_i32, %c0_i32_0 : i32, i32
  }
  func.func @transform_3(%arg0: i32) -> (i32, i32) {
    %c0_i32 = arith.constant 0 : i32
    %c0_i32_0 = arith.constant 0 : i32
    %c0_i32_1 = arith.constant 0 : i32
    return %c0_i32, %c0_i32_0 : i32, i32
  }
  func.func @transform_4(%arg0: i32) -> (i32, i32) {
    %c0_i32 = arith.constant 0 : i32
    %c0_i32_0 = arith.constant 0 : i32
    %c0_i32_1 = arith.constant 0 : i32
    return %c0_i32, %c0_i32_0 : i32, i32
  }
  func.func @transform_5(%arg0: i32) -> (i32, i32) {
    %c0_i32 = arith.constant 0 : i32
    %c0_i32_0 = arith.constant 0 : i32
    %c0_i32_1 = arith.constant 0 : i32
    return %c0_i32, %c0_i32_0 : i32, i32
  }
  func.func @transform_6(%arg0: i32) -> (i32, i32) {
    %c0_i32 = arith.constant 0 : i32
    %c0_i32_0 = arith.constant 0 : i32
    %c0_i32_1 = arith.constant 0 : i32
    return %c0_i32, %c0_i32_0 : i32, i32
  }
  func.func @transform_7(%arg0: i32) -> (i32, i32) {
    %c0_i32 = arith.constant 0 : i32
    %c0_i32_0 = arith.constant 0 : i32
    return %arg0, %c0_i32 : i32, i32
  }
}

</mosaic_0001>

<llo_original>
// kernel: tpu_custom_call.1
$region0: #{tpu_custom_call.1}
  #allocation0 [shape = 'u32[]', space=smem, size = 0x4, offset = 0x4, fixed_abs, tag = 'smem constant byte address 0x4 - core index']
  #allocation1 [shape = 'u32[144,128]{1,0:T(1,128)}', space=vmem, size = 0x12000, scoped, tag = 'internal scratch']
  #allocation2 [shape = 'f32[1,1]{1,0:T(1,128)S(1)}', space=vmem, size = 0x200, scoped, tag = 'scoped memory for tpu_custom_call.1']
  %s0 = inlined_call_operand.vmem [shape: f32[16,16], index: 0, kind: input, shape index: {}]
  %s1 = inlined_call_operand.vmem [shape: f32[32,16], index: 1, kind: input, shape index: {}]
  %s2 = inlined_call_operand.vmem [shape: f32[32,1], index: 2, kind: input, shape index: {}]
  %s3 = inlined_call_operand.vmem [shape: f32[32,32], index: 3, kind: input, shape index: {}]
  %s4 = inlined_call_operand.vmem [shape: f32[32,1], index: 4, kind: input, shape index: {}]
  %s5 = inlined_call_operand.vmem [shape: f32[1,32], index: 5, kind: input, shape index: {}]
  %s6 = inlined_call_operand.<no memory space> [shape: f32[1,1], index: 6, kind: input, shape index: {}]
  %s7 = inlined_call_operand.hbm [shape: f32[1,16], index: 7, kind: output, shape index: {}]
  %s8 = sld [smem:[#allocation0]]
  $region38: #{tpu_custom_call.1} parent=0
    _
  %s10 = ssub.s32 1, %s8
  %s11 = scalar_select 0, %s10, %s8
  %v12 = vstv %s6
  %13 = vst [vmem:[#allocation2] sm:$0x1] %v12
  $region1: #{tpu_custom_call.1} parent=0
    #allocation3 [shape = 'u8[512]{0}', space=vmem, size = 0x400, scoped, tag = 'output window, operand 0, single buffered']
    #allocation4 [shape = 's32[1]{0}', space=sflag, size = 0x4, scoped, tag = 'scoped memory for tpu_custom_call.1']
    %14 = vsyncpa [#allocation4], 0
    // Predicated region
    $region2: #{tpu_custom_call.1} parent=1 // pred_check
      _
    $region3: #{tpu_custom_call.1} parent=1 // pred_check_branch
      %16 = sbr.rel (0) target = $region5
    $region4: #{tpu_custom_call.1} parent=1 // pred_region
      _
    $region5: #{tpu_custom_call.1} parent=1 // pred_fallthru
      _
    // Predicated region
    $region6: #{tpu_custom_call.1} parent=1 // pred_check
      _
    $region7: #{tpu_custom_call.1} parent=1 // pred_check_branch
      %18 = sbr.rel (0) target = $region9
    $region8: #{tpu_custom_call.1} parent=1 // pred_region
      _
    $region9: #{tpu_custom_call.1} parent=1 // pred_fallthru
      _
    // Predicated region
    $region10: #{tpu_custom_call.1} parent=1 // pred_check
      _
    $region11: #{tpu_custom_call.1} parent=1 // pred_check_branch
      %20 = sbr.rel (0) target = $region13
    $region12: #{tpu_custom_call.1} parent=1 // pred_region
      _
    $region13: #{tpu_custom_call.1} parent=1 // pred_fallthru
      _
    // Predicated region
    $region14: #{tpu_custom_call.1} parent=1 // pred_check
      _
    $region15: #{tpu_custom_call.1} parent=1 // pred_check_branch
      %22 = sbr.rel (0) target = $region17
    $region16: #{tpu_custom_call.1} parent=1 // pred_region
      _
    $region17: #{tpu_custom_call.1} parent=1 // pred_fallthru
      _
    // Predicated region
    $region18: #{tpu_custom_call.1} parent=1 // pred_check
      _
    $region19: #{tpu_custom_call.1} parent=1 // pred_check_branch
      %24 = sbr.rel (0) target = $region21
    $region20: #{tpu_custom_call.1} parent=1 // pred_region
      _
    $region21: #{tpu_custom_call.1} parent=1 // pred_fallthru
      _
    // Predicated region
    $region22: #{tpu_custom_call.1} parent=1 // pred_check
      _
    $region23: #{tpu_custom_call.1} parent=1 // pred_check_branch
      %26 = sbr.rel (0) target = $region25
    $region24: #{tpu_custom_call.1} parent=1 // pred_region
      _
    $region25: #{tpu_custom_call.1} parent=1 // pred_fallthru
      _
    // Predicated region
    $region26: #{tpu_custom_call.1} parent=1 // pred_check
      _
    $region27: #{tpu_custom_call.1} parent=1 // pred_check_branch
      %28 = sbr.rel (0) target = $region29
    $region28: #{tpu_custom_call.1} parent=1 // pred_region
      _
    $region29: #{tpu_custom_call.1} parent=1 // pred_fallthru
      _
    %v29 = vld [vmem:[%s0] sm:$0xff]
    %v30 = vld [vmem:[%s0 + $0x8] sm:$0xff]
    %v31 = vld [vmem:[%s1] sm:$0xff]
    %v32 = vld [vmem:[%s1 + $0x8] sm:$0xff]
    %v33 = vld [vmem:[%s1 + $0x10] sm:$0xff]
    %v34 = vld [vmem:[%s1 + $0x18] sm:$0xff]
    %v35 = vld [vmem:[%s2] sm:$0xff]
    %v36 = vld [vmem:[%s2 + $0x8] sm:$0xff]
    %v37 = vld [vmem:[%s2 + $0x10] sm:$0xff]
    %v38 = vld [vmem:[%s2 + $0x18] sm:$0xff]
    %40 = vset.pattern.permute.xlu0 0
    %41 = vperm.xlu0 %40, %v35
    %v42 = vpop.permute.xlu0 %41
    %45 = vset.pattern.permute.xlu0 0
    %46 = vperm.xlu0 %45, %v36
    %v47 = vpop.permute.xlu0 %46
    %50 = vset.pattern.permute.xlu0 0
    %51 = vperm.xlu0 %50, %v37
    %v52 = vpop.permute.xlu0 %51
    %55 = vset.pattern.permute.xlu0 0
    %56 = vperm.xlu0 %55, %v38
    %v57 = vpop.permute.xlu0 %56
    %vm59 = vcmask 130048
    %v61 = vsel %vm59, %v31, 0
    %v64 = vsel %vm59, %v32, 0
    %v67 = vsel %vm59, %v33, 0
    %v70 = vsel %vm59, %v34, 0
    %v73 = vsel %vm59, %v29, 0
    %v76 = vsel %vm59, %v30, 0
    %78 = vmatprep.subr.mxu0 0.0
    %79 = vmatpush1.xpose.msra.mxu0 %v73
    %80 = vmatprep.subr.mxu0 0.0
    %81 = vmatpush1.xpose.msra.mxu0 %v76
    %82 = vmatprep.subr.mxu0 0.0
    %83 = vmatpush1.xpose.msra.mxu0 0.0
    %84 = vmatprep.subr.mxu0 0.0
    %85 = vmatpush1.xpose.msra.mxu0 0.0
    %86 = vmatprep.subr.mxu0 0.0
    %87 = vmatpush1.xpose.msra.mxu0 0.0
    %88 = vmatprep.subr.mxu0 0.0
    %89 = vmatpush1.xpose.msra.mxu0 0.0
    %90 = vmatprep.subr.mxu0 0.0
    %91 = vmatpush1.xpose.msra.mxu0 0.0
    %92 = vmatprep.subr.mxu0 0.0
    %93 = vmatpush1.xpose.msra.mxu0 0.0
    %94 = vmatprep.subr.mxu0 0.0
    %95 = vmatpush1.xpose.msra.mxu0 0.0
    %96 = vmatprep.subr.mxu0 0.0
    %97 = vmatpush1.xpose.msra.mxu0 0.0
    %98 = vmatprep.subr.mxu0 0.0
    %99 = vmatpush1.xpose.msra.mxu0 0.0
    %100 = vmatprep.subr.mxu0 0.0
    %101 = vmatpush1.xpose.msra.mxu0 0.0
    %102 = vmatprep.subr.mxu0 0.0
    %103 = vmatpush1.xpose.msra.mxu0 0.0
    %104 = vmatprep.subr.mxu0 0.0
    %105 = vmatpush1.xpose.msra.mxu0 0.0
    %106 = vmatprep.subr.mxu0 0.0
    %107 = vmatpush1.xpose.msra.mxu0 0.0
    %108 = vmatprep.subr.mxu0 0.0
    %109 = vmatpush1.xpose.msra.mxu0 0.0
    %110 = vmatprep.subr.mxu0 0.0
    %111 = vmatpush1.xpose.msra.mxu0 0.0
    %112 = vmatprep.subr.mxu0 0.0
    %113 = vmatpush1.xpose.msra.mxu0 0.0
    %114 = vmatprep.subr.mxu0 0.0
    %115 = vmatpush1.xpose.msra.mxu0 0.0
    %116 = vmatprep.subr.mxu0 0.0
    %117 = vmatpush1.xpose.msra.mxu0 0.0
    %118 = vmatprep.subr.mxu0 0.0
    %119 = vmatpush1.xpose.msra.mxu0 0.0
    %120 = vmatprep.subr.mxu0 0.0
    %121 = vmatpush1.xpose.msra.mxu0 0.0
    %122 = vmatprep.subr.mxu0 0.0
    %123 = vmatpush1.xpose.msra.mxu0 0.0
    %124 = vmatprep.subr.mxu0 0.0
    %125 = vmatpush1.xpose.msra.mxu0 0.0
    %126 = vmatprep.subr.mxu0 0.0
    %127 = vmatpush1.xpose.msra.mxu0 0.0
    %128 = vmatprep.subr.mxu0 0.0
    %129 = vmatpush1.xpose.msra.mxu0 0.0
    %130 = vmatprep.subr.mxu0 0.0
    %131 = vmatpush1.xpose.msra.mxu0 0.0
    %132 = vmatprep.subr.mxu0 0.0
    %133 = vmatpush1.xpose.msra.mxu0 0.0
    %134 = vmatprep.subr.mxu0 0.0
    %135 = vmatpush1.xpose.msra.mxu0 0.0
    %136 = vmatprep.subr.mxu0 0.0
    %137 = vmatpush1.xpose.msra.mxu0 0.0
    %138 = vmatprep.subr.mxu0 0.0
    %139 = vmatpush1.xpose.msra.mxu0 0.0
    %140 = vmatprep.subr.mxu0 0.0
    %141 = vmatpush1.xpose.msra.mxu0 0.0
    %142 = vmatprep.mubr.f32.mxu0 0.0
    %143 = vmatmul.mubr.f32.gmra.mrb[0].mxu0 %v61
    %v144 = vpop.f32.mrb[0].mxu0
    %v145 = vadd.f32 %v42, %v144
    %v146 = vpop.f32.mrb[0].mxu0
    %147 = vmatprep.mubr.f32.mxu0 0.0
    %148 = vmatmul.mubr.f32.gmra.mrb[0].mxu0 %v64
    %v149 = vpop.f32.mrb[0].mxu0
    %v150 = vadd.f32 %v47, %v149
    %v151 = vpop.f32.mrb[0].mxu0
    %152 = vmatprep.mubr.f32.mxu0 0.0
    %153 = vmatmul.mubr.f32.gmra.mrb[0].mxu0 %v67
    %v154 = vpop.f32.mrb[0].mxu0
    %v155 = vadd.f32 %v52, %v154
    %v156 = vpop.f32.mrb[0].mxu0
    %157 = vmatprep.mubr.f32.mxu0 0.0
    %158 = vmatmul.mubr.f32.gmra.mrb[0].mxu0 %v70
    %v159 = vpop.f32.mrb[0].mxu0
    %v160 = vadd.f32 %v57, %v159
    %v161 = vpop.f32.mrb[0].mxu0
    %162 = vdwg.mxu0
    %v163 = vmax.f32 %v145, 0.0
    %v164 = vmax.f32 %v150, 0.0
    %v165 = vmax.f32 %v155, 0.0
    %v166 = vmax.f32 %v160, 0.0
    %v167 = vld [vmem:[%s3] sm:$0xff]
    %v168 = vld [vmem:[%s3 + $0x8] sm:$0xff]
    %v169 = vld [vmem:[%s3 + $0x10] sm:$0xff]
    %v170 = vld [vmem:[%s3 + $0x18] sm:$0xff]
    %v171 = vld [vmem:[%s4] sm:$0xff]
    %v172 = vld [vmem:[%s4 + $0x8] sm:$0xff]
    %v173 = vld [vmem:[%s4 + $0x10] sm:$0xff]
    %v174 = vld [vmem:[%s4 + $0x18] sm:$0xff]
    %176 = vset.pattern.permute.xlu0 0
    %177 = vperm.xlu0 %176, %v171
    %v178 = vpop.permute.xlu0 %177
    %181 = vset.pattern.permute.xlu0 0
    %182 = vperm.xlu0 %181, %v172
    %v183 = vpop.permute.xlu0 %182
    %186 = vset.pattern.permute.xlu0 0
    %187 = vperm.xlu0 %186, %v173
    %v188 = vpop.permute.xlu0 %187
    %191 = vset.pattern.permute.xlu0 0
    %192 = vperm.xlu0 %191, %v174
    %v193 = vpop.permute.xlu0 %192
    %vm195 = vcmask 261120
    %v197 = vsel %vm195, %v167, 0
    %v200 = vsel %vm195, %v168, 0
    %v203 = vsel %vm195, %v169, 0
    %v206 = vsel %vm195, %v170, 0
    %208 = vmatprep.subr.mxu0 0.0
    %209 = vmatpush1.msra.mxu0 %v163
    %210 = vmatprep.subr.mxu0 0.0
    %211 = vmatpush1.msra.mxu0 %v164
    %212 = vmatprep.subr.mxu0 0.0
    %213 = vmatpush1.msra.mxu0 %v165
    %214 = vmatprep.subr.mxu0 0.0
    %215 = vmatpush1.msra.mxu0 %v166
    %216 = vmatprep.subr.mxu0 0.0
    %217 = vmatpush1.msra.mxu0 0.0
    %218 = vmatprep.subr.mxu0 0.0
    %219 = vmatpush1.msra.mxu0 0.0
    %220 = vmatprep.subr.mxu0 0.0
    %221 = vmatpush1.msra.mxu0 0.0
    %222 = vmatprep.subr.mxu0 0.0
    %223 = vmatpush1.msra.mxu0 0.0
    %224 = vmatprep.subr.mxu0 0.0
    %225 = vmatpush1.msra.mxu0 0.0
    %226 = vmatprep.subr.mxu0 0.0
    %227 = vmatpush1.msra.mxu0 0.0
    %228 = vmatprep.subr.mxu0 0.0
    %229 = vmatpush1.msra.mxu0 0.0
    %230 = vmatprep.subr.mxu0 0.0
    %231 = vmatpush1.msra.mxu0 0.0
    %232 = vmatprep.subr.mxu0 0.0
    %233 = vmatpush1.msra.mxu0 0.0
    %234 = vmatprep.subr.mxu0 0.0
    %235 = vmatpush1.msra.mxu0 0.0
    %236 = vmatprep.subr.mxu0 0.0
    %237 = vmatpush1.msra.mxu0 0.0
    %238 = vmatprep.subr.mxu0 0.0
    %239 = vmatpush1.msra.mxu0 0.0
    %240 = vmatprep.subr.mxu0 0.0
    %241 = vmatpush1.msra.mxu0 0.0
    %242 = vmatprep.subr.mxu0 0.0
    %243 = vmatpush1.msra.mxu0 0.0
    %244 = vmatprep.subr.mxu0 0.0
    %245 = vmatpush1.msra.mxu0 0.0
    %246 = vmatprep.subr.mxu0 0.0
    %247 = vmatpush1.msra.mxu0 0.0
    %248 = vmatprep.subr.mxu0 0.0
    %249 = vmatpush1.msra.mxu0 0.0
    %250 = vmatprep.subr.mxu0 0.0
    %251 = vmatpush1.msra.mxu0 0.0
    %252 = vmatprep.subr.mxu0 0.0
    %253 = vmatpush1.msra.mxu0 0.0
    %254 = vmatprep.subr.mxu0 0.0
    %255 = vmatpush1.msra.mxu0 0.0
    %256 = vmatprep.subr.mxu0 0.0
    %257 = vmatpush1.msra.mxu0 0.0
    %258 = vmatprep.subr.mxu0 0.0
    %259 = vmatpush1.msra.mxu0 0.0
    %260 = vmatprep.subr.mxu0 0.0
    %261 = vmatpush1.msra.mxu0 0.0
    %262 = vmatprep.subr.mxu0 0.0
    %263 = vmatpush1.msra.mxu0 0.0
    %264 = vmatprep.subr.mxu0 0.0
    %265 = vmatpush1.msra.mxu0 0.0
    %266 = vmatprep.subr.mxu0 0.0
    %267 = vmatpush1.msra.mxu0 0.0
    %268 = vmatprep.subr.mxu0 0.0
    %269 = vmatpush1.msra.mxu0 0.0
    %270 = vmatprep.subr.mxu0 0.0
    %271 = vmatpush1.msra.mxu0 0.0
    %272 = vmatprep.mubr.f32.mxu0 0.0
    %273 = vmatmul.mubr.f32.gmra.mrb[0].mxu0 %v197
    %v274 = vpop.f32.mrb[0].mxu0
    %v275 = vadd.f32 %v178, %v274
    %v276 = vpop.f32.mrb[0].mxu0
    %277 = vmatprep.mubr.f32.mxu0 0.0
    %278 = vmatmul.mubr.f32.gmra.mrb[0].mxu0 %v200
    %v279 = vpop.f32.mrb[0].mxu0
    %v280 = vadd.f32 %v183, %v279
    %v281 = vpop.f32.mrb[0].mxu0
    %282 = vmatprep.mubr.f32.mxu0 0.0
    %283 = vmatmul.mubr.f32.gmra.mrb[0].mxu0 %v203
    %v284 = vpop.f32.mrb[0].mxu0
    %v285 = vadd.f32 %v188, %v284
    %v286 = vpop.f32.mrb[0].mxu0
    %287 = vmatprep.mubr.f32.mxu0 0.0
    %288 = vmatmul.mubr.f32.gmra.mrb[0].mxu0 %v206
    %v289 = vpop.f32.mrb[0].mxu0
    %v290 = vadd.f32 %v193, %v289
    %v291 = vpop.f32.mrb[0].mxu0
    %292 = vdwg.mxu0
    %v293 = vmax.f32 %v275, 0.0
    %v294 = vmax.f32 %v280, 0.0
    %v295 = vmax.f32 %v285, 0.0
    %v296 = vmax.f32 %v290, 0.0
    %v297 = vld [vmem:[%s5] sm:$0x1]
    %v298 = vld [vmem:[#allocation2] sm:$0x1]
    %300 = vset.pattern.permute.xlu0 0
    %301 = vperm.xlu0 %300, %v298
    %v302 = vpop.permute.xlu0 %301
    %v304 = vlaneseq
    %v305 = vshrl.u32 %v304, 7
    %v306 = vsub.s32 0, %v305
    %v307 = vrot.slane %v302, %v306
    %v309 = vsel %vm195, %v297, 0
    %311 = vmatprep.subr.mxu0 0.0
    %312 = vmatpush1.msra.mxu0 %v293
    %313 = vmatprep.subr.mxu0 0.0
    %314 = vmatpush1.msra.mxu0 %v294
    %315 = vmatprep.subr.mxu0 0.0
    %316 = vmatpush1.msra.mxu0 %v295
    %317 = vmatprep.subr.mxu0 0.0
    %318 = vmatpush1.msra.mxu0 %v296
    %319 = vmatprep.subr.mxu0 0.0
    %320 = vmatpush1.msra.mxu0 0.0
    %321 = vmatprep.subr.mxu0 0.0
    %322 = vmatpush1.msra.mxu0 0.0
    %323 = vmatprep.subr.mxu0 0.0
    %324 = vmatpush1.msra.mxu0 0.0
    %325 = vmatprep.subr.mxu0 0.0
    %326 = vmatpush1.msra.mxu0 0.0
    %327 = vmatprep.subr.mxu0 0.0
    %328 = vmatpush1.msra.mxu0 0.0
    %329 = vmatprep.subr.mxu0 0.0
    %330 = vmatpush1.msra.mxu0 0.0
    %331 = vmatprep.subr.mxu0 0.0
    %332 = vmatpush1.msra.mxu0 0.0
    %333 = vmatprep.subr.mxu0 0.0
    %334 = vmatpush1.msra.mxu0 0.0
    %335 = vmatprep.subr.mxu0 0.0
    %336 = vmatpush1.msra.mxu0 0.0
    %337 = vmatprep.subr.mxu0 0.0
    %338 = vmatpush1.msra.mxu0 0.0
    %339 = vmatprep.subr.mxu0 0.0
    %340 = vmatpush1.msra.mxu0 0.0
    %341 = vmatprep.subr.mxu0 0.0
    %342 = vmatpush1.msra.mxu0 0.0
    %343 = vmatprep.subr.mxu0 0.0
    %344 = vmatpush1.msra.mxu0 0.0
    %345 = vmatprep.subr.mxu0 0.0
    %346 = vmatpush1.msra.mxu0 0.0
    %347 = vmatprep.subr.mxu0 0.0
    %348 = vmatpush1.msra.mxu0 0.0
    %349 = vmatprep.subr.mxu0 0.0
    %350 = vmatpush1.msra.mxu0 0.0
    %351 = vmatprep.subr.mxu0 0.0
    %352 = vmatpush1.msra.mxu0 0.0
    %353 = vmatprep.subr.mxu0 0.0
    %354 = vmatpush1.msra.mxu0 0.0
    %355 = vmatprep.subr.mxu0 0.0
    %356 = vmatpush1.msra.mxu0 0.0
    %357 = vmatprep.subr.mxu0 0.0
    %358 = vmatpush1.msra.mxu0 0.0
    %359 = vmatprep.subr.mxu0 0.0
    %360 = vmatpush1.msra.mxu0 0.0
    %361 = vmatprep.subr.mxu0 0.0
    %362 = vmatpush1.msra.mxu0 0.0
    %363 = vmatprep.subr.mxu0 0.0
    %364 = vmatpush1.msra.mxu0 0.0
    %365 = vmatprep.subr.mxu0 0.0
    %366 = vmatpush1.msra.mxu0 0.0
    %367 = vmatprep.subr.mxu0 0.0
    %368 = vmatpush1.msra.mxu0 0.0
    %369 = vmatprep.subr.mxu0 0.0
    %370 = vmatpush1.msra.mxu0 0.0
    %371 = vmatprep.subr.mxu0 0.0
    %372 = vmatpush1.msra.mxu0 0.0
    %373 = vmatprep.subr.mxu0 0.0
    %374 = vmatpush1.msra.mxu0 0.0
    %375 = vmatprep.mubr.f32.mxu0 0.0
    %376 = vmatmul.mubr.f32.gmra.mrb[0].mxu0 %v309
    %v377 = vpop.f32.mrb[0].mxu0
    %v378 = vadd.f32 %v307, %v377
    %v379 = vpop.f32.mrb[0].mxu0
    %380 = vdwg.mxu0
    %vm381 = vcmask 122880
    %382 = vst.msk [vmem:[#allocation3] sm:$0x1] %vm381, %v378
    // Predicated region
    $region30: #{tpu_custom_call.1} parent=1 // pred_check
      _
    $region31: #{tpu_custom_call.1} parent=1 // pred_check_branch
      %384 = sbr.rel (0) target = $region33
    $region32: #{tpu_custom_call.1} parent=1 // pred_region
      %s386 = ssub.s32 16, 16
      %387 = vsyncadd [#allocation4], %s386
      %s389 = sshll.u32 [#allocation3], 4
      %s390 = int_to_ptr.vmem [resolvable:$true] %s389
      %392 = dma.vmem_to_hbm [thread:$0]  %s390, 16, %s7, [#allocation4]
    $region33: #{tpu_custom_call.1} parent=1 // pred_fallthru
      _
    // Predicated region
    $region34: #{tpu_custom_call.1} parent=1 // pred_check
      _
    $region35: #{tpu_custom_call.1} parent=1 // pred_check_branch
      %394 = sbr.rel (0) target = $region37
    $region36: #{tpu_custom_call.1} parent=1 // pred_region
      %395 = dma.done [#allocation4], 16
    $region37: #{tpu_custom_call.1} parent=1 // pred_fallthru
      _
    %396 = vsyncpa [#allocation4], 1

</llo_original>
